<compile_context>
chip_gen: v5e
topology: v5e:2x2
jax: 0.10.0
libtpu: 0.0.40
codegen_flags: <defaults>
</compile_context>

<pallas_src>
import jax
import jax.numpy as jnp
from jax.experimental import pallas as pl
from jax.experimental.pallas import tpu as pltpu


def _round_up(x, m):
    return ((x + m - 1) // m) * m


def _attention_kernel(dh_ref, enc_ref, wdec_ref, wenc_ref, b_ref, out_ref):
    # dh_ref : (TB, Dd)      decoder hidden rows for this batch tile
    # enc_ref: (S, TB, E2)   encoder outputs, original [S, B, E2] layout sliced on batch
    # wdec   : (Dd, A)
    # wenc   : (E2, A)
    # b_ref  : (1, A)
    # out_ref: (TB, S)
    S, TB, E2 = enc_ref.shape

    # Decoder-hidden projection (TB, Dd) @ (Dd, A) on the MXU, f32 accumulation.
    # Bias is folded in here once per batch tile (cheap: TB x A) instead of being
    # added across the full (S, TB, A) energy tensor.
    proj_dec = jnp.dot(dh_ref[...], wdec_ref[...],
                       preferred_element_type=jnp.float32) + b_ref[...]   # (TB, A)

    # Encoder projection: fuse the whole (S, TB) tile into a single MXU matmul.
    # TB is a multiple of 8, so this reshape is layout-preserving (no relayout copy).
    enc2d = enc_ref[...].reshape(S * TB, E2)
    proj_enc = jnp.dot(enc2d, wenc_ref[...],
                       preferred_element_type=jnp.float32)                # (S*TB, A)
    proj_enc = proj_enc.reshape(S, TB, proj_enc.shape[-1])                # (S, TB, A)

    # energy = tanh(concat(dh, enc) @ W + b); the concat becomes the sum of two matmuls.
    energy = jnp.tanh(proj_enc + proj_dec[None, :, :])                    # (S, TB, A)

    # Attention logits: reduce over attn_dim (XLU lane reduce), then lay out as (TB, S)
    # for the output block (small XLU transpose of an (S, TB) f32 tile).
    scores = jnp.sum(energy, axis=2)                                      # (S, TB)
    logits = scores.T                                                     # (TB, S)

    # Numerically stable softmax over src_len (f32 throughout, exact division to match
    # the PyTorch reference bit-for-bit within tolerance).
    m = jnp.max(logits, axis=1, keepdims=True)
    ex = jnp.exp(logits - m)
    denom = jnp.sum(ex, axis=1, keepdims=True)
    out_ref[...] = (ex / denom).astype(out_ref.dtype)


def attention_forward(decoder_hidden, encoder_outputs, weight, bias,
                      *, block_b=None, stream_dtype=None):
    """decoder_hidden : [B, dec_hid_dim]          (f32)
       encoder_outputs: [S, B, 2*enc_hid_dim]     (PyTorch layout, NOT pre-transposed)
       weight         : [attn_dim, attn_in]       (PyTorch nn.Linear layout)
       bias           : [attn_dim]
       returns softmax attention weights [B, S] (f32)."""
    S, B, E2 = encoder_outputs.shape
    Bd, Dd = decoder_hidden.shape
    A, attn_in = weight.shape
    assert Bd == B and attn_in == Dd + E2

    # Split + transpose the linear weight once (tiny).  cat order is (decoder, encoder).
    w_t = jnp.transpose(weight)                 # (attn_in, A)
    w_dec = w_t[:Dd, :]                         # (Dd, A)
    w_enc = w_t[Dd:, :]                         # (E2, A)
    bias2d = bias.reshape(1, A).astype(jnp.float32)

    if stream_dtype is not None:
        # Optional HBM-bandwidth saving: stream inputs/weights narrower; accumulation and
        # softmax stay f32 via preferred_element_type inside the kernel.
        decoder_hidden = decoder_hidden.astype(stream_dtype)
        encoder_outputs = encoder_outputs.astype(stream_dtype)
        w_dec = w_dec.astype(stream_dtype)
        w_enc = w_enc.astype(stream_dtype)

    # Batch tile: multiple of 8 (sublane) so the in-kernel reshape is layout-preserving;
    # capped so the double-buffered encoder tile stays well inside VMEM (v7x: 64 MiB).
    # Partial batch tiles at the edge are handled by Pallas block padding: padded rows only
    # produce garbage in their own output rows, which are never written back.
    if block_b is None:
        vmem_budget = 8 * 1024 * 1024            # per enc buffer (x2 for double buffering)
        bytes_per_row = S * E2 * jnp.dtype(encoder_outputs.dtype).itemsize
        tb_cap = max(8, (vmem_budget // max(bytes_per_row, 1)) // 8 * 8)
        block_b = min(_round_up(B, 8), 128, tb_cap)
    TB = block_b
    assert TB % 8 == 0, "block_b must be a multiple of 8"
    grid_b = pl.cdiv(B, TB)

    out = pl.pallas_call(
        _attention_kernel,
        out_shape=jax.ShapeDtypeStruct((B, S), jnp.float32),
        grid_spec=pltpu.PrefetchScalarGridSpec(
            num_scalar_prefetch=0,
            grid=(grid_b,),
            in_specs=[
                pl.BlockSpec((TB, Dd), lambda b: (b, 0)),
                # original [S, B, E2] layout, batch-sliced by the DMA (no wrapper transpose)
                pl.BlockSpec((S, TB, E2), lambda b: (0, b, 0)),
                pl.BlockSpec((Dd, A), lambda b: (0, 0)),
                pl.BlockSpec((E2, A), lambda b: (0, 0)),
                pl.BlockSpec((1, A), lambda b: (0, 0)),
            ],
            out_specs=pl.BlockSpec((TB, S), lambda b: (b, 0)),
        ),
        compiler_params=pltpu.CompilerParams(
            dimension_semantics=("parallel",),
            vmem_limit_bytes=96 * 1024 * 1024),
    )(decoder_hidden, encoder_outputs, w_dec, w_enc, bias2d)
    return out


def attention_reference(decoder_hidden, encoder_outputs, weight, bias):
    """Pure-JAX reference matching the PyTorch forward exactly."""
    S = encoder_outputs.shape[0]
    rep = jnp.repeat(decoder_hidden[:, None, :], S, axis=1)       # [B, S, Dd]
    enc = jnp.transpose(encoder_outputs, (1, 0, 2))               # [B, S, 2Eh]
    cat = jnp.concatenate((rep, enc), axis=2)                     # [B, S, attn_in]
    energy = jnp.tanh(jnp.einsum("bsi,ai->bsa", cat, weight) + bias)
    attention = jnp.sum(energy, axis=2)                           # [B, S]
    return jax.nn.softmax(attention, axis=1)


if __name__ == "__main__":
    root_key = jax.random.PRNGKey(0)

    def run_case(case_idx, enc_hid_dim, dec_hid_dim, attn_dim, batch, src_len, block_b=None):
        attn_in = enc_hid_dim * 2 + dec_hid_dim
        key = jax.random.fold_in(root_key, case_idx)
        k1, k2, k3, k4 = jax.random.split(key, 4)

        # PyTorch nn.Linear layout: [out_features, in_features]
        weight = jax.random.normal(k1, (attn_dim, attn_in), jnp.float32) * 0.1
        bias = jax.random.normal(k2, (attn_dim,), jnp.float32) * 0.1
        decoder_hidden = jax.random.normal(k3, (batch, dec_hid_dim), jnp.float32)
        encoder_outputs = jax.random.normal(k4, (src_len, batch, 2 * enc_hid_dim), jnp.float32)

        out = attention_forward(decoder_hidden, encoder_outputs, weight, bias,
                                block_b=block_b)
        out = jax.block_until_ready(out)

        ref = attention_reference(decoder_hidden, encoder_outputs, weight, bias)
        assert out.shape == (batch, src_len)
        assert jnp.allclose(out, ref, atol=1e-5, rtol=1e-5), \
            f"mismatch vs reference in case {case_idx}"

    # small shapes matching the module spec (single padded batch tile, batch < 8)
    run_case(0, enc_hid_dim=16, dec_hid_dim=32, attn_dim=64, batch=2, src_len=8)
    # multi-step grid with a partial batch tile at the edge
    run_case(1, enc_hid_dim=64, dec_hid_dim=64, attn_dim=128, batch=20, src_len=40, block_b=8)
    # default tiling, batch not a multiple of 8, attn_dim not a multiple of 128
    run_case(2, enc_hid_dim=32, dec_hid_dim=48, attn_dim=80, batch=10, src_len=24)

    print("KERNEL_OK")
</pallas_src>

<mosaic_0001>
module attributes {stable_mosaic.version = 11 : i64} {
  func.func @_attention_kernel(%arg0: i32, %arg1: memref<8x32xf32, #tpu.memory_space<vmem>>, %arg2: memref<8x8x32xf32, #tpu.memory_space<vmem>>, %arg3: memref<32x64xf32, #tpu.memory_space<vmem>>, %arg4: memref<32x64xf32, #tpu.memory_space<vmem>>, %arg5: memref<1x64xf32, #tpu.memory_space<vmem>>, %arg6: memref<8x8xf32, #tpu.memory_space<vmem>>) attributes {dimension_semantics = [#tpu.dimension_semantics<parallel>], iteration_bounds = array<i64: 1>, scalar_prefetch = 0 : i64, scratch_operands = 0 : i64, tpu.core_type = #tpu.core_type<tc>, window_params = [{transform_indices = @transform_0, window_bounds = array<i64: 8, 32>}, {transform_indices = @transform_1, window_bounds = array<i64: 8, 8, 32>}, {pipeline_mode = #tpu.pipeline_mode<synchronous>, transform_indices = @transform_2, window_bounds = array<i64: 32, 64>}, {pipeline_mode = #tpu.pipeline_mode<synchronous>, transform_indices = @transform_3, window_bounds = array<i64: 32, 64>}, {pipeline_mode = #tpu.pipeline_mode<synchronous>, transform_indices = @transform_4, window_bounds = array<i64: 1, 64>}, {transform_indices = @transform_5, window_bounds = array<i64: 8, 8>}]} {
    %c0 = arith.constant 0 : index
    %c0_0 = arith.constant 0 : index
    %0 = vector.load %arg1[%c0, %c0_0] : memref<8x32xf32, #tpu.memory_space<vmem>>, vector<8x32xf32>
    %c0_1 = arith.constant 0 : index
    %c0_2 = arith.constant 0 : index
    %1 = vector.load %arg3[%c0_1, %c0_2] : memref<32x64xf32, #tpu.memory_space<vmem>>, vector<32x64xf32>
    %cst = arith.constant dense<0.000000e+00> : vector<8x64xf32>
    %2 = tpu.matmul %0, %1, %cst {dimension_numbers = #tpu.dot_dimension_numbers<[1], [0], [0], [1], [0, 0, 1, 1], [], []>} : vector<8x32xf32>, vector<32x64xf32>, vector<8x64xf32> -> vector<8x64xf32>
    %c0_3 = arith.constant 0 : index
    %c0_4 = arith.constant 0 : index
    %3 = vector.load %arg5[%c0_3, %c0_4] : memref<1x64xf32, #tpu.memory_space<vmem>>, vector<1x64xf32>
    %4 = vector.broadcast %3 : vector<1x64xf32> to vector<8x64xf32>
    %5 = arith.addf %2, %4 : vector<8x64xf32>
    %c0_5 = arith.constant 0 : index
    %c0_6 = arith.constant 0 : index
    %c0_7 = arith.constant 0 : index
    %6 = vector.load %arg2[%c0_5, %c0_6, %c0_7] : memref<8x8x32xf32, #tpu.memory_space<vmem>>, vector<8x8x32xf32>
    %7 = vector.shape_cast %6 : vector<8x8x32xf32> to vector<64x32xf32>
    %c0_8 = arith.constant 0 : index
    %c0_9 = arith.constant 0 : index
    %8 = vector.load %arg4[%c0_8, %c0_9] : memref<32x64xf32, #tpu.memory_space<vmem>>, vector<32x64xf32>
    %cst_10 = arith.constant dense<0.000000e+00> : vector<64x64xf32>
    %9 = tpu.matmul %7, %8, %cst_10 {dimension_numbers = #tpu.dot_dimension_numbers<[1], [0], [0], [1], [0, 0, 1, 1], [], []>} : vector<64x32xf32>, vector<32x64xf32>, vector<64x64xf32> -> vector<64x64xf32>
    %10 = vector.shape_cast %9 : vector<64x64xf32> to vector<8x8x64xf32>
    %11 = vector.shape_cast %5 : vector<8x64xf32> to vector<1x8x64xf32>
    %12 = vector.broadcast %11 : vector<1x8x64xf32> to vector<8x8x64xf32>
    %13 = arith.addf %10, %12 : vector<8x8x64xf32>
    %14 = math.tanh %13 : vector<8x8x64xf32>
    %cst_11 = arith.constant dense<0.000000e+00> : vector<8x8xf32>
    %15 = vector.multi_reduction <add>, %14, %cst_11 [2] : vector<8x8x64xf32> to vector<8x8xf32>
    %16 = tpu.transpose %15, [1, 0] : vector<8x8xf32> -> vector<8x8xf32>
    %cst_12 = arith.constant dense<0xFF800000> : vector<8xf32>
    %17 = vector.multi_reduction <maximumf>, %16, %cst_12 [1] : vector<8x8xf32> to vector<8xf32>
    %18 = vector.shape_cast %17 : vector<8xf32> to vector<8x1xf32>
    %19 = vector.broadcast %18 : vector<8x1xf32> to vector<8x8xf32>
    %20 = arith.subf %16, %19 : vector<8x8xf32>
    %21 = math.exp %20 : vector<8x8xf32>
    %cst_13 = arith.constant dense<0.000000e+00> : vector<8xf32>
    %22 = vector.multi_reduction <add>, %21, %cst_13 [1] : vector<8x8xf32> to vector<8xf32>
    %23 = vector.shape_cast %22 : vector<8xf32> to vector<8x1xf32>
    %24 = vector.broadcast %23 : vector<8x1xf32> to vector<8x8xf32>
    %25 = arith.divf %21, %24 : vector<8x8xf32>
    %c0_14 = arith.constant 0 : index
    %c0_15 = arith.constant 0 : index
    %26 = vector.load %arg6[%c0_14, %c0_15] : memref<8x8xf32, #tpu.memory_space<vmem>>, vector<8x8xf32>
    tpu.vector_store %arg6[%c0_14, %c0_15], %25 {strides = array<i32>} : memref<8x8xf32, #tpu.memory_space<vmem>>, vector<8x8xf32>,
    return
  }
  func.func @transform_0(%arg0: i32) -> (i32, i32) {
    %c0_i32 = arith.constant 0 : i32
    %c0_i32_0 = arith.constant 0 : i32
    return %arg0, %c0_i32 : i32, i32
  }
  func.func @transform_1(%arg0: i32) -> (i32, i32, i32) {
    %c0_i32 = arith.constant 0 : i32
    %c0_i32_0 = arith.constant 0 : i32
    %c0_i32_1 = arith.constant 0 : i32
    return %c0_i32, %arg0, %c0_i32_0 : i32, i32, i32
  }
  func.func @transform_2(%arg0: i32) -> (i32, i32) {
    %c0_i32 = arith.constant 0 : i32
    %c0_i32_0 = arith.constant 0 : i32
    %c0_i32_1 = arith.constant 0 : i32
    return %c0_i32, %c0_i32_0 : i32, i32
  }
  func.func @transform_3(%arg0: i32) -> (i32, i32) {
    %c0_i32 = arith.constant 0 : i32
    %c0_i32_0 = arith.constant 0 : i32
    %c0_i32_1 = arith.constant 0 : i32
    return %c0_i32, %c0_i32_0 : i32, i32
  }
  func.func @transform_4(%arg0: i32) -> (i32, i32) {
    %c0_i32 = arith.constant 0 : i32
    %c0_i32_0 = arith.constant 0 : i32
    %c0_i32_1 = arith.constant 0 : i32
    return %c0_i32, %c0_i32_0 : i32, i32
  }
  func.func @transform_5(%arg0: i32) -> (i32, i32) {
    %c0_i32 = arith.constant 0 : i32
    %c0_i32_0 = arith.constant 0 : i32
    return %arg0, %c0_i32 : i32, i32
  }
}

</mosaic_0001>

<llo_original>
// kernel: tpu_custom_call.1
$region0: #{tpu_custom_call.1}
  #allocation0 [shape = 'u32[]', space=smem, size = 0x4, offset = 0x4, fixed_abs, tag = 'smem constant byte address 0x4 - core index']
  #allocation1 [shape = 'u32[72,128]{1,0:T(1,128)}', space=vmem, size = 0x9000, scoped, tag = 'internal scratch']
  #allocation11 [shape = 's32[]', space=sflag, size = 0x4, offset = 0, fixed_abs, tag = 'sflag constant byte address 0x0 - dummy sync flag']
  %s0 = inlined_call_operand.hbm [shape: f32[2,32], index: 0, kind: input, shape index: {}]
  %s1 = inlined_call_operand.hbm [shape: f32[8,2,32], index: 1, kind: input, shape index: {}]
  %s2 = inlined_call_operand.hbm [shape: f32[32,64], index: 2, kind: input, shape index: {}]
  %s3 = inlined_call_operand.hbm [shape: f32[32,64], index: 3, kind: input, shape index: {}]
  %s4 = inlined_call_operand.vmem [shape: f32[1,64], index: 4, kind: input, shape index: {}]
  %s5 = inlined_call_operand.hbm [shape: f32[2,8], index: 5, kind: output, shape index: {}]
  %s6 = sld [smem:[#allocation0]]
  $region46: #{tpu_custom_call.1} parent=0
    _
  %s8 = ssub.s32 1, %s6
  %s9 = scalar_select 0, %s8, %s6
  $region1: #{tpu_custom_call.1} parent=0
    #allocation2 [shape = 'u8[4096]{0}', space=vmem, size = 0x1000, scoped, tag = 'input window, operand 0, single buffered']
    #allocation3 [shape = 's32[1]{0}', space=sflag, size = 0x4, scoped, tag = 'scoped memory for tpu_custom_call.1']
    #allocation4 [shape = 's32[1]{0}', space=sflag, size = 0x4, scoped, tag = 'scoped memory for tpu_custom_call.1']
    #allocation5 [shape = 'u8[32768]{0}', space=vmem, size = 0x8000, scoped, tag = 'input window, operand 1, single buffered']
    #allocation6 [shape = 's32[1]{0}', space=sflag, size = 0x4, scoped, tag = 'scoped memory for tpu_custom_call.1']
    #allocation7 [shape = 'u8[16384]{0}', space=vmem, size = 0x4000, scoped, tag = 'input window, operand 2, single buffered']
    #allocation8 [shape = 'u8[16384]{0}', space=vmem, size = 0x4000, scoped, tag = 'input window, operand 3, single buffered']
    #allocation9 [shape = 's32[1]{0}', space=sflag, size = 0x4, scoped, tag = 'scoped memory for tpu_custom_call.1']
    #allocation10 [shape = 'u8[4096]{0}', space=vmem, size = 0x1000, scoped, tag = 'output window, operand 0, single buffered']
    %10 = vsyncpa [#allocation3], 0
    %11 = vsyncpa [#allocation6], 0
    %12 = vsyncpa [#allocation9], 0
    %13 = vsyncpa [#allocation4], 0
    // Predicated region
    $region2: #{tpu_custom_call.1} parent=1 // pred_check
      _
    $region3: #{tpu_custom_call.1} parent=1 // pred_check_branch
      %15 = sbr.rel (0) target = $region5
    $region4: #{tpu_custom_call.1} parent=1 // pred_region
      %17 = vsyncadd [#allocation3], 96
      %s18 = sshll.u32 %s0, 4
      %s19 = int_to_ptr.hbm [resolvable:$true] %s18
      %s20 = sshll.u32 [#allocation2], 4
      %s21 = int_to_ptr.vmem [resolvable:$true] %s20
      %26 = dma.hbm_to_vmem [thread:$0]  %s19, 32, %s21, [#allocation3], 32, 32, 2
    $region5: #{tpu_custom_call.1} parent=1 // pred_fallthru
      _
    // Predicated region
    $region6: #{tpu_custom_call.1} parent=1 // pred_check
      _
    $region7: #{tpu_custom_call.1} parent=1 // pred_check_branch
      %28 = sbr.rel (0) target = $region9
    $region8: #{tpu_custom_call.1} parent=1 // pred_region
      #allocation12 [shape = 'u32[6]{0}', space=smem, size = 0x18, scoped, tag = 'DMA stride descriptor']
      %30 = vsyncadd [#allocation6], 768
      %s32 = sshll.u32 1, 14
      %s33 = sxor.u32 4294967295, %s32
      %s35 = sld [smem:[#allocation0]]
      %s36 = sadd.s32 2, %s35
      %s38 = sshll.u32 7, 26
      %s39 = sxor.u32 4294967295, %s38
      %s40 = sand.u32 0, %s39
      %s41 = sshll.u32 %s36, 26
      %s42 = sor.u32 %s40, %s41
      %s43 = sshll.u32 %s1, 4
      %s44 = int_to_ptr.hbm [resolvable:$true] %s43
      %s45 = sshll.u32 [#allocation5], 4
      %s46 = int_to_ptr.vmem [resolvable:$true] %s45
      %52 = sst [smem:[#allocation12]] 32
      %s53 = scalar_lea.smem [#allocation12], 1
      %54 = sst [smem:[%s53]] 128
      %s55 = scalar_lea.smem [#allocation12], 2
      %56 = sst [smem:[%s55]] 1
      %s57 = scalar_lea.smem [#allocation12], 3
      %58 = sst [smem:[%s57]] 32
      %s59 = scalar_lea.smem [#allocation12], 4
      %60 = sst [smem:[%s59]] 32
      %s61 = scalar_lea.smem [#allocation12], 5
      %62 = sst [smem:[%s61]] 2
      %64 = dma.general %s44, 256, %s46, [#allocation6], [#allocation11], [#allocation12], %s42, 0
    $region9: #{tpu_custom_call.1} parent=1 // pred_fallthru
      _
    // Predicated region
    $region10: #{tpu_custom_call.1} parent=1 // pred_check
      _
    $region11: #{tpu_custom_call.1} parent=1 // pred_check_branch
      %66 = sbr.rel (0) target = $region13
    $region12: #{tpu_custom_call.1} parent=1 // pred_region
      %68 = vsyncadd [#allocation6], 0
      %s69 = sshll.u32 %s2, 4
      %s70 = int_to_ptr.hbm [resolvable:$true] %s69
      %s71 = sshll.u32 [#allocation7], 4
      %s72 = int_to_ptr.vmem [resolvable:$true] %s71
      %77 = dma.hbm_to_vmem [thread:$0]  %s70, 512, %s72, [#allocation6], 128, 128, 8
    $region13: #{tpu_custom_call.1} parent=1 // pred_fallthru
      _
    // Predicated region
    $region14: #{tpu_custom_call.1} parent=1 // pred_check
      _
    $region15: #{tpu_custom_call.1} parent=1 // pred_check_branch
      %79 = sbr.rel (0) target = $region17
    $region16: #{tpu_custom_call.1} parent=1 // pred_region
      %81 = vsyncadd [#allocation9], 0
      %s82 = sshll.u32 %s3, 4
      %s83 = int_to_ptr.hbm [resolvable:$true] %s82
      %s84 = sshll.u32 [#allocation8], 4
      %s85 = int_to_ptr.vmem [resolvable:$true] %s84
      %90 = dma.hbm_to_vmem [thread:$0]  %s83, 512, %s85, [#allocation9], 128, 128, 8
    $region17: #{tpu_custom_call.1} parent=1 // pred_fallthru
      _
    // Predicated region
    $region18: #{tpu_custom_call.1} parent=1 // pred_check
      _
    $region19: #{tpu_custom_call.1} parent=1 // pred_check_branch
      %92 = sbr.rel (0) target = $region21
    $region20: #{tpu_custom_call.1} parent=1 // pred_region
      _
    $region21: #{tpu_custom_call.1} parent=1 // pred_fallthru
      _
    // Predicated region
    $region22: #{tpu_custom_call.1} parent=1 // pred_check
      _
    $region23: #{tpu_custom_call.1} parent=1 // pred_check_branch
      %94 = sbr.rel (0) target = $region25
    $region24: #{tpu_custom_call.1} parent=1 // pred_region
      %96 = dma.done [#allocation3], 128
    $region25: #{tpu_custom_call.1} parent=1 // pred_fallthru
      _
    // Predicated region
    $region26: #{tpu_custom_call.1} parent=1 // pred_check
      _
    $region27: #{tpu_custom_call.1} parent=1 // pred_check_branch
      %98 = sbr.rel (0) target = $region29
    $region28: #{tpu_custom_call.1} parent=1 // pred_region
      %100 = dma.done [#allocation6], 1024
    $region29: #{tpu_custom_call.1} parent=1 // pred_fallthru
      _
    // Predicated region
    $region30: #{tpu_custom_call.1} parent=1 // pred_check
      _
    $region31: #{tpu_custom_call.1} parent=1 // pred_check_branch
      %102 = sbr.rel (0) target = $region33
    $region32: #{tpu_custom_call.1} parent=1 // pred_region
      %104 = dma.done [#allocation6], 512
    $region33: #{tpu_custom_call.1} parent=1 // pred_fallthru
      _
    // Predicated region
    $region34: #{tpu_custom_call.1} parent=1 // pred_check
      _
    $region35: #{tpu_custom_call.1} parent=1 // pred_check_branch
      %106 = sbr.rel (0) target = $region37
    $region36: #{tpu_custom_call.1} parent=1 // pred_region
      %108 = dma.done [#allocation9], 512
    $region37: #{tpu_custom_call.1} parent=1 // pred_fallthru
      _
    %v109 = vld [vmem:[#allocation2] sm:$0xff]
    %v110 = vld [vmem:[#allocation7] sm:$0xff]
    %v111 = vld [vmem:[#allocation7 + $0x8] sm:$0xff]
    %v112 = vld [vmem:[#allocation7 + $0x10] sm:$0xff]
    %v113 = vld [vmem:[#allocation7 + $0x18] sm:$0xff]
    %v114 = vld [vmem:[%s4] sm:$0x1]
    %v116 = vperm.slane %v114, 0
    %vm118 = vcmask 261120
    %v120 = vsel %vm118, %v109, 0
    %122 = vmatpush.msra.mxu0 0.0
    %123 = vmatpush.msra.mxu0 0.0
    %124 = vmatpush.msra.mxu0 0.0
    %125 = vmatpush.msra.mxu0 0.0
    %126 = vmatpush.msra.mxu0 0.0
    %127 = vmatpush.msra.mxu0 0.0
    %128 = vmatpush.msra.mxu0 0.0
    %129 = vmatpush.msra.mxu0 0.0
    %130 = vmatpush.msra.mxu0 0.0
    %131 = vmatpush.msra.mxu0 0.0
    %132 = vmatpush.msra.mxu0 0.0
    %133 = vmatpush.msra.mxu0 0.0
    %134 = vmatpush.msra.mxu0 %v113
    %135 = vmatpush.msra.mxu0 %v112
    %136 = vmatpush.msra.mxu0 %v111
    %137 = vmatpush.msra.mxu0 %v110
    %138 = vmatmul.f32.gmra.mxu0 %v120
    %v139 = vpop.f32.mrf.mxu0
    %v140 = vadd.f32 %v116, %v139
    %141 = vdwg.mxu0
    %v142 = vld [vmem:[#allocation5] sm:$0xff]
    %v143 = vld [vmem:[#allocation5 + $0x8] sm:$0xff]
    %v144 = vld [vmem:[#allocation5 + $0x10] sm:$0xff]
    %v145 = vld [vmem:[#allocation5 + $0x18] sm:$0xff]
    %v146 = vld [vmem:[#allocation5 + $0x20] sm:$0xff]
    %v147 = vld [vmem:[#allocation5 + $0x28] sm:$0xff]
    %v148 = vld [vmem:[#allocation5 + $0x30] sm:$0xff]
    %v149 = vld [vmem:[#allocation5 + $0x38] sm:$0xff]
    %v150 = vld [vmem:[#allocation8] sm:$0xff]
    %v151 = vld [vmem:[#allocation8 + $0x8] sm:$0xff]
    %v152 = vld [vmem:[#allocation8 + $0x10] sm:$0xff]
    %v153 = vld [vmem:[#allocation8 + $0x18] sm:$0xff]
    %v155 = vsel %vm118, %v142, 0
    %v158 = vsel %vm118, %v143, 0
    %v161 = vsel %vm118, %v144, 0
    %v164 = vsel %vm118, %v145, 0
    %v167 = vsel %vm118, %v146, 0
    %v170 = vsel %vm118, %v147, 0
    %v173 = vsel %vm118, %v148, 0
    %v176 = vsel %vm118, %v149, 0
    %178 = vmatpush.msra.mxu0 0.0
    %179 = vmatpush.msra.mxu0 0.0
    %180 = vmatpush.msra.mxu0 0.0
    %181 = vmatpush.msra.mxu0 0.0
    %182 = vmatpush.msra.mxu0 0.0
    %183 = vmatpush.msra.mxu0 0.0
    %184 = vmatpush.msra.mxu0 0.0
    %185 = vmatpush.msra.mxu0 0.0
    %186 = vmatpush.msra.mxu0 0.0
    %187 = vmatpush.msra.mxu0 0.0
    %188 = vmatpush.msra.mxu0 0.0
    %189 = vmatpush.msra.mxu0 0.0
    %190 = vmatpush.msra.mxu0 %v153
    %191 = vmatpush.msra.mxu0 %v152
    %192 = vmatpush.msra.mxu0 %v151
    %193 = vmatpush.msra.mxu0 %v150
    %194 = vmatmul.f32.gmra.mxu0 %v155
    %v195 = vpop.f32.mrf.mxu0
    %v196 = vadd.f32 0.0, %v195
    %197 = vmatmul.f32.gmra.mxu0 %v158
    %v198 = vpop.f32.mrf.mxu0
    %v199 = vadd.f32 0.0, %v198
    %200 = vmatmul.f32.gmra.mxu0 %v161
    %v201 = vpop.f32.mrf.mxu0
    %v202 = vadd.f32 0.0, %v201
    %203 = vmatmul.f32.gmra.mxu0 %v164
    %v204 = vpop.f32.mrf.mxu0
    %v205 = vadd.f32 0.0, %v204
    %206 = vmatmul.f32.gmra.mxu0 %v167
    %v207 = vpop.f32.mrf.mxu0
    %v208 = vadd.f32 0.0, %v207
    %209 = vmatmul.f32.gmra.mxu0 %v170
    %v210 = vpop.f32.mrf.mxu0
    %v211 = vadd.f32 0.0, %v210
    %212 = vmatmul.f32.gmra.mxu0 %v173
    %v213 = vpop.f32.mrf.mxu0
    %v214 = vadd.f32 0.0, %v213
    %215 = vmatmul.f32.gmra.mxu0 %v176
    %v216 = vpop.f32.mrf.mxu0
    %v217 = vadd.f32 0.0, %v216
    %218 = vdwg.mxu0
    %v219 = vadd.f32 %v196, %v140
    %v220 = vadd.f32 %v199, %v140
    %v221 = vadd.f32 %v202, %v140
    %v222 = vadd.f32 %v205, %v140
    %v223 = vadd.f32 %v208, %v140
    %v224 = vadd.f32 %v211, %v140
    %v225 = vadd.f32 %v214, %v140
    %v226 = vadd.f32 %v217, %v140
    %v227 = vtanh.pop %v219
    %v228 = vtanh.pop %v220
    %v229 = vtanh.pop %v221
    %v230 = vtanh.pop %v222
    %v231 = vtanh.pop %v223
    %v232 = vtanh.pop %v224
    %v233 = vtanh.pop %v225
    %v234 = vtanh.pop %v226
    %vm235 = vcmask 523264
    %v236 = vsel %vm235, %v227, 0.0
    %237 = vadd.xlane.f32.xlu0 %v236
    %v238 = vpop.xlane.xlu0 %237
    %v239 = vsel %vm235, %v228, 0.0
    %240 = vadd.xlane.f32.xlu0 %v239
    %v241 = vpop.xlane.xlu0 %240
    %v242 = vsel %vm235, %v229, 0.0
    %243 = vadd.xlane.f32.xlu0 %v242
    %v244 = vpop.xlane.xlu0 %243
    %v245 = vsel %vm235, %v230, 0.0
    %246 = vadd.xlane.f32.xlu0 %v245
    %v247 = vpop.xlane.xlu0 %246
    %v248 = vsel %vm235, %v231, 0.0
    %249 = vadd.xlane.f32.xlu0 %v248
    %v250 = vpop.xlane.xlu0 %249
    %v251 = vsel %vm235, %v232, 0.0
    %252 = vadd.xlane.f32.xlu0 %v251
    %v253 = vpop.xlane.xlu0 %252
    %v254 = vsel %vm235, %v233, 0.0
    %255 = vadd.xlane.f32.xlu0 %v254
    %v256 = vpop.xlane.xlu0 %255
    %v257 = vsel %vm235, %v234, 0.0
    %258 = vadd.xlane.f32.xlu0 %v257
    %v259 = vpop.xlane.xlu0 %258
    %v268 = vlaneseq
    %v269 = vand.u32 %v268, 127
    %v270 = vperm.slane %v238, %v269
    %v271 = vperm.slane %v241, %v269
    %v272 = vperm.slane %v244, %v269
    %v273 = vperm.slane %v247, %v269
    %v274 = vperm.slane %v250, %v269
    %v275 = vperm.slane %v253, %v269
    %v276 = vperm.slane %v256, %v269
    %v277 = vperm.slane %v259, %v269
    %vm278 = vcmask 1041409
    %v279 = vsel %vm278, %v271, %v270
    %vm280 = vcmask 1042434
    %v281 = vsel %vm280, %v272, %v279
    %vm282 = vcmask 1043459
    %v283 = vsel %vm282, %v273, %v281
    %vm284 = vcmask 1044484
    %v285 = vsel %vm284, %v274, %v283
    %vm286 = vcmask 1045509
    %v287 = vsel %vm286, %v275, %v285
    %vm288 = vcmask 1046534
    %v289 = vsel %vm288, %v276, %v287
    %vm290 = vcmask 1047559
    %v291 = vsel %vm290, %v277, %v289
    %293 = vxpose.xlu0.b32.start [1/16] %v291, 128
    %294 = vxpose.xlu0.b32.cont [2/16] 0.0, 128
    %295 = vxpose.xlu0.b32.cont [3/16] 0.0, 128
    %296 = vxpose.xlu0.b32.cont [4/16] 0.0, 128
    %297 = vxpose.xlu0.b32.cont [5/16] 0.0, 128
    %298 = vxpose.xlu0.b32.cont [6/16] 0.0, 128
    %299 = vxpose.xlu0.b32.cont [7/16] 0.0, 128
    %300 = vxpose.xlu0.b32.cont [8/16] 0.0, 128
    %301 = vxpose.xlu0.b32.cont [9/16] 0.0, 128
    %302 = vxpose.xlu0.b32.cont [10/16] 0.0, 128
    %303 = vxpose.xlu0.b32.cont [11/16] 0.0, 128
    %304 = vxpose.xlu0.b32.cont [12/16] 0.0, 128
    %305 = vxpose.xlu0.b32.cont [13/16] 0.0, 128
    %306 = vxpose.xlu0.b32.cont [14/16] 0.0, 128
    %307 = vxpose.xlu0.b32.cont [15/16] 0.0, 128
    %308 = vxpose.xlu0.b32.end [16/16] 0.0, 128
    %v309 = vpop.trf.xlu0
    %v310 = vpop.trf.xlu0
    %v311 = vpop.trf.xlu0
    %v312 = vpop.trf.xlu0
    %v313 = vpop.trf.xlu0
    %v314 = vpop.trf.xlu0
    %v315 = vpop.trf.xlu0
    %v316 = vpop.trf.xlu0
    %v317 = vpop.trf.xlu0
    %v318 = vpop.trf.xlu0
    %v319 = vpop.trf.xlu0
    %v320 = vpop.trf.xlu0
    %v321 = vpop.trf.xlu0
    %v322 = vpop.trf.xlu0
    %v323 = vpop.trf.xlu0
    %v324 = vpop.trf.xlu0
    %vm325 = vcmask 64512
    %v326 = vsel %vm325, %v309, -inf
    %327 = vmax.xlane.f32.xlu0 %v326
    %v328 = vpop.xlane.xlu0 %327
    %v329 = vsub.f32 %v309, %v328
    %v330 = vmul.f32 %v329, 1.442695
    %v331 = vpow.pop %v330
    %v332 = vsel %vm325, %v331, 0.0
    %333 = vadd.xlane.f32.xlu0 %v332
    %v334 = vpop.xlane.xlu0 %333
    %v335 = vrcp.pop %v334
    %v336 = vmul.f32 %v334, %v335
    %v337 = vsub.f32 1.0, %v336
    %v338 = vmul.f32 %v335, %v337
    %v339 = vadd.f32 %v335, %v338
    %vm340 = vweird.f32 %v334
    %vm341 = vweird.f32 %v335
    %vm342 = vmor %vm340, %vm341
    %v343 = vsel %vm342, %v335, %v339
    %v344 = vand.u32 2147483647, %v334
    %vm345 = vcmp.eq.f32.partialorder %v344, 8.507059e+37
    %v346 = vand.u32 %v334, 2147483648
    %v347 = vor.u32 1.1754944e-38, %v346
    %v348 = vsel %vm345, %v347, %v343
    %v349 = vmul.f32 %v331, %v348
    %350 = vst.msk [vmem:[#allocation10] sm:$0xff] %vm325, %v349
    // Predicated region
    $region38: #{tpu_custom_call.1} parent=1 // pred_check
      _
    $region39: #{tpu_custom_call.1} parent=1 // pred_check_branch
      %352 = sbr.rel (0) target = $region41
    $region40: #{tpu_custom_call.1} parent=1 // pred_region
      %354 = vsyncadd [#allocation4], 96
      %s355 = sshll.u32 [#allocation10], 4
      %s356 = int_to_ptr.vmem [resolvable:$true] %s355
      %s357 = sshll.u32 %s5, 4
      %s358 = int_to_ptr.hbm [resolvable:$true] %s357
      %363 = dma.vmem_to_hbm [thread:$0]  %s356, 32, %s358, [#allocation4], 32, 32, 2
    $region41: #{tpu_custom_call.1} parent=1 // pred_fallthru
      _
    // Predicated region
    $region42: #{tpu_custom_call.1} parent=1 // pred_check
      _
    $region43: #{tpu_custom_call.1} parent=1 // pred_check_branch
      %365 = sbr.rel (0) target = $region45
    $region44: #{tpu_custom_call.1} parent=1 // pred_region
      %367 = dma.done [#allocation4], 128
    $region45: #{tpu_custom_call.1} parent=1 // pred_fallthru
      _
    %368 = vsyncpa [#allocation3], 1
    %369 = vsyncpa [#allocation6], 1
    %370 = vsyncpa [#allocation9], 1
    %371 = vsyncpa [#allocation4], 1

</llo_original>
